<compile_context>
chip_gen: v7x
topology: tpu7x:2x2x1
jax: 0.10.0
libtpu: 0.0.40
codegen_flags: <defaults>
</compile_context>

<pallas_src>
import functools
import math

import jax
import jax.numpy as jnp
from jax.experimental import pallas as pl
from jax.experimental.pallas import tpu as pltpu

_LANE = 128            # vreg lane width (last dim)
_MAX_TILE_ROWS = 2048  # 2048 x 128 f32 = 1 MiB per pipeline buffer


def _mix32(x):
    """murmur3/splitmix-style 32-bit finalizer (good avalanche, cheap VPU ops)."""
    x = x ^ (x >> 16)
    x = x * jnp.uint32(0x85EBCA6B)
    x = x ^ (x >> 13)
    x = x * jnp.uint32(0xC2B2AE35)
    x = x ^ (x >> 16)
    return x


def _gaussian_noise_kernel(seed_ref, x_ref, o_ref, *, sigma):
    tile_rows, lane = x_ref.shape
    block_elems = tile_rows * lane

    # Global linear element index for every element of this block.
    base = (pl.program_id(0) * block_elems).astype(jnp.uint32)
    row = jax.lax.broadcasted_iota(jnp.int32, (tile_rows, lane), 0)
    col = jax.lax.broadcasted_iota(jnp.int32, (tile_rows, lane), 1)
    idx = (row * lane + col).astype(jnp.uint32) + base

    # Counter-based PRNG: key = f(seed, global index); two decorrelated streams.
    seed_u = seed_ref[0].astype(jnp.uint32)
    key = idx * jnp.uint32(2654435761) + seed_u * jnp.uint32(0x9E3779B9)
    bits1 = _mix32(key + jnp.uint32(0x9E3779B9))
    bits2 = _mix32(key ^ jnp.uint32(0x68BC21EB))

    # Uniforms from the top 24 bits: u1 in (0, 1], u2 in [0, 1).
    inv24 = 1.0 / 16777216.0
    u1 = ((bits1 >> 8).astype(jnp.int32).astype(jnp.float32) + 1.0) * inv24
    u2 = (bits2 >> 8).astype(jnp.int32).astype(jnp.float32) * inv24

    # Box-Muller -> standard normal.
    r = jnp.sqrt(-2.0 * jnp.log(u1))
    noise = r * jnp.cos((2.0 * math.pi) * u2)

    # out = x * (1 + sigma * noise)  (folded form of x + sigma*x*noise)
    x = x_ref[...].astype(jnp.float32)
    o_ref[...] = (x * (1.0 + sigma * noise)).astype(o_ref.dtype)


def gaussian_noise(x, seed, sigma=0.1, training=True, is_relative_detach=True):
    """Pallas implementation of GaussianNoise.forward (training forward pass)."""
    del is_relative_detach  # forward value is identical for both settings
    if (not training) or sigma == 0.0:
        return x

    orig_shape = x.shape
    dtype = x.dtype
    n = x.size

    # Flatten to a lane-dense (rows, 128) slab; pick the largest row tile that
    # fits (capped at 1 MiB f32 per buffer) and pad only if needed.
    rows_needed = -(-n // _LANE)
    tile_rows = min(_MAX_TILE_ROWS, ((rows_needed + 15) // 16) * 16)
    rows = ((rows_needed + tile_rows - 1) // tile_rows) * tile_rows
    n_pad = rows * _LANE

    flat = x.reshape(-1)
    if n_pad != n:
        flat = jnp.pad(flat, (0, n_pad - n))
    x2d = flat.reshape(rows, _LANE)

    grid = (rows // tile_rows,)
    seed_arr = jnp.asarray([seed], dtype=jnp.int32)

    out2d = pl.pallas_call(
        functools.partial(_gaussian_noise_kernel, sigma=float(sigma)),
        out_shape=jax.ShapeDtypeStruct((rows, _LANE), dtype),
        grid_spec=pltpu.PrefetchScalarGridSpec(
            num_scalar_prefetch=1,
            grid=grid,
            in_specs=[pl.BlockSpec((tile_rows, _LANE), lambda i, seed: (i, 0))],
            out_specs=pl.BlockSpec((tile_rows, _LANE), lambda i, seed: (i, 0)),
        ),
        compiler_params=pltpu.CompilerParams(
            dimension_semantics=("parallel",),
            vmem_limit_bytes=32 * 1024 * 1024,
        ),
    )(seed_arr, x2d)

    out = out2d.reshape(-1)
    if n_pad != n:
        out = out[:n]
    return out.reshape(orig_shape)


if __name__ == "__main__":
    key = jax.random.PRNGKey(0)
    # Small NCHW input consistent with a conv-style feature map.
    x = jax.random.normal(key, (2, 4, 16, 16), dtype=jnp.float32)

    sigma = 0.1
    y = gaussian_noise(x, seed=42, sigma=sigma, training=True)
    y = jax.block_until_ready(y)

    assert y.shape == x.shape and y.dtype == x.dtype

    # Eval mode (or sigma == 0) is identity, matching the PyTorch module.
    y_eval = jax.block_until_ready(
        gaussian_noise(x, seed=42, sigma=sigma, training=False))
    assert bool(jnp.all(y_eval == x))

    # Sanity: recovered noise = (y/x - 1)/sigma should be ~ N(0, 1).
    mask = jnp.abs(x) > 1e-3
    noise_est = jnp.where(mask, (y / jnp.where(mask, x, 1.0) - 1.0) / sigma, 0.0)
    cnt = jnp.sum(mask)
    mean = jnp.sum(noise_est) / cnt
    var = jnp.sum(jnp.where(mask, (noise_est - mean) ** 2, 0.0)) / cnt
    assert abs(float(mean)) < 0.3, float(mean)
    assert 0.6 < float(jnp.sqrt(var)) < 1.4, float(jnp.sqrt(var))

    print("KERNEL_OK")
</pallas_src>

<mosaic_0001>
module attributes {stable_mosaic.version = 11 : i64} {
  func.func @_gaussian_noise_kernel(%arg0: i32, %arg1: memref<1xi32, #tpu.memory_space<smem>>, %arg2: memref<16x128xf32, #tpu.memory_space<vmem>>, %arg3: memref<16x128xf32, #tpu.memory_space<vmem>>) attributes {dimension_semantics = [#tpu.dimension_semantics<parallel>], iteration_bounds = array<i64: 1>, scalar_prefetch = 1 : i64, scratch_operands = 0 : i64, tpu.core_type = #tpu.core_type<tc>, window_params = [{transform_indices = @transform_0, window_bounds = array<i64: 16, 128>}, {transform_indices = @transform_1, window_bounds = array<i64: 16, 128>}]} {
    %c2048_i32 = arith.constant 2048 : i32
    %0 = arith.muli %arg0, %c2048_i32 : i32
    %1 = tpu.iota {dimensions = array<i32: 0>} : vector<16x128xi32>
    %2 = tpu.iota {dimensions = array<i32: 1>} : vector<16x128xi32>
    %c128_i32 = arith.constant 128 : i32
    %3 = vector.broadcast %c128_i32 : i32 to vector<16x128xi32>
    %4 = arith.muli %1, %3 : vector<16x128xi32>
    %5 = arith.addi %4, %2 : vector<16x128xi32>
    %6 = vector.broadcast %0 : i32 to vector<16x128xi32>
    %7 = arith.addi %5, %6 : vector<16x128xi32>
    %c0 = arith.constant 0 : index
    %8 = memref.load %arg1[%c0] : memref<1xi32, #tpu.memory_space<smem>>
    %c-1640531535_i32 = arith.constant -1640531535 : i32
    %9 = vector.broadcast %c-1640531535_i32 : i32 to vector<16x128xi32>
    %10 = arith.muli %7, %9 : vector<16x128xi32>
    %c-1640531527_i32 = arith.constant -1640531527 : i32
    %11 = arith.muli %8, %c-1640531527_i32 : i32
    %12 = vector.broadcast %11 : i32 to vector<16x128xi32>
    %13 = arith.addi %10, %12 : vector<16x128xi32>
    %c-1640531527_i32_0 = arith.constant -1640531527 : i32
    %14 = vector.broadcast %c-1640531527_i32_0 : i32 to vector<16x128xi32>
    %15 = arith.addi %13, %14 : vector<16x128xi32>
    %c16_i32 = arith.constant 16 : i32
    %16 = vector.broadcast %c16_i32 : i32 to vector<16x128xi32>
    %17 = arith.shrui %15, %16 : vector<16x128xi32>
    %18 = arith.xori %15, %17 : vector<16x128xi32>
    %c-2048144789_i32 = arith.constant -2048144789 : i32
    %19 = vector.broadcast %c-2048144789_i32 : i32 to vector<16x128xi32>
    %20 = arith.muli %18, %19 : vector<16x128xi32>
    %c13_i32 = arith.constant 13 : i32
    %21 = vector.broadcast %c13_i32 : i32 to vector<16x128xi32>
    %22 = arith.shrui %20, %21 : vector<16x128xi32>
    %23 = arith.xori %20, %22 : vector<16x128xi32>
    %c-1028477387_i32 = arith.constant -1028477387 : i32
    %24 = vector.broadcast %c-1028477387_i32 : i32 to vector<16x128xi32>
    %25 = arith.muli %23, %24 : vector<16x128xi32>
    %c16_i32_1 = arith.constant 16 : i32
    %26 = vector.broadcast %c16_i32_1 : i32 to vector<16x128xi32>
    %27 = arith.shrui %25, %26 : vector<16x128xi32>
    %28 = arith.xori %25, %27 : vector<16x128xi32>
    %c1757159915_i32 = arith.constant 1757159915 : i32
    %29 = vector.broadcast %c1757159915_i32 : i32 to vector<16x128xi32>
    %30 = arith.xori %13, %29 : vector<16x128xi32>
    %c16_i32_2 = arith.constant 16 : i32
    %31 = vector.broadcast %c16_i32_2 : i32 to vector<16x128xi32>
    %32 = arith.shrui %30, %31 : vector<16x128xi32>
    %33 = arith.xori %30, %32 : vector<16x128xi32>
    %c-2048144789_i32_3 = arith.constant -2048144789 : i32
    %34 = vector.broadcast %c-2048144789_i32_3 : i32 to vector<16x128xi32>
    %35 = arith.muli %33, %34 : vector<16x128xi32>
    %c13_i32_4 = arith.constant 13 : i32
    %36 = vector.broadcast %c13_i32_4 : i32 to vector<16x128xi32>
    %37 = arith.shrui %35, %36 : vector<16x128xi32>
    %38 = arith.xori %35, %37 : vector<16x128xi32>
    %c-1028477387_i32_5 = arith.constant -1028477387 : i32
    %39 = vector.broadcast %c-1028477387_i32_5 : i32 to vector<16x128xi32>
    %40 = arith.muli %38, %39 : vector<16x128xi32>
    %c16_i32_6 = arith.constant 16 : i32
    %41 = vector.broadcast %c16_i32_6 : i32 to vector<16x128xi32>
    %42 = arith.shrui %40, %41 : vector<16x128xi32>
    %43 = arith.xori %40, %42 : vector<16x128xi32>
    %c8_i32 = arith.constant 8 : i32
    %44 = vector.broadcast %c8_i32 : i32 to vector<16x128xi32>
    %45 = arith.shrui %28, %44 : vector<16x128xi32>
    %46 = arith.sitofp %45 : vector<16x128xi32> to vector<16x128xf32>
    %cst = arith.constant 1.000000e+00 : f32
    %47 = vector.broadcast %cst : f32 to vector<16x128xf32>
    %48 = arith.addf %46, %47 : vector<16x128xf32>
    %cst_7 = arith.constant 5.96046448E-8 : f32
    %49 = vector.broadcast %cst_7 : f32 to vector<16x128xf32>
    %50 = arith.mulf %48, %49 : vector<16x128xf32>
    %c8_i32_8 = arith.constant 8 : i32
    %51 = vector.broadcast %c8_i32_8 : i32 to vector<16x128xi32>
    %52 = arith.shrui %43, %51 : vector<16x128xi32>
    %53 = arith.sitofp %52 : vector<16x128xi32> to vector<16x128xf32>
    %cst_9 = arith.constant 5.96046448E-8 : f32
    %54 = vector.broadcast %cst_9 : f32 to vector<16x128xf32>
    %55 = arith.mulf %53, %54 : vector<16x128xf32>
    %56 = math.log %50 : vector<16x128xf32>
    %cst_10 = arith.constant -2.000000e+00 : f32
    %57 = vector.broadcast %cst_10 : f32 to vector<16x128xf32>
    %58 = arith.mulf %57, %56 : vector<16x128xf32>
    %59 = math.sqrt %58 : vector<16x128xf32>
    %cst_11 = arith.constant 6.28318548 : f32
    %60 = vector.broadcast %cst_11 : f32 to vector<16x128xf32>
    %61 = arith.mulf %60, %55 : vector<16x128xf32>
    %62 = math.cos %61 : vector<16x128xf32>
    %63 = arith.mulf %59, %62 : vector<16x128xf32>
    %c0_12 = arith.constant 0 : index
    %c0_13 = arith.constant 0 : index
    %64 = vector.load %arg2[%c0_12, %c0_13] : memref<16x128xf32, #tpu.memory_space<vmem>>, vector<16x128xf32>
    %cst_14 = arith.constant 1.000000e-01 : f32
    %65 = vector.broadcast %cst_14 : f32 to vector<16x128xf32>
    %66 = arith.mulf %65, %63 : vector<16x128xf32>
    %cst_15 = arith.constant 1.000000e+00 : f32
    %67 = vector.broadcast %cst_15 : f32 to vector<16x128xf32>
    %68 = arith.addf %67, %66 : vector<16x128xf32>
    %69 = arith.mulf %64, %68 : vector<16x128xf32>
    %c0_16 = arith.constant 0 : index
    %c0_17 = arith.constant 0 : index
    %70 = vector.load %arg3[%c0_16, %c0_17] : memref<16x128xf32, #tpu.memory_space<vmem>>, vector<16x128xf32>
    tpu.vector_store %arg3[%c0_16, %c0_17], %69 {strides = array<i32>} : memref<16x128xf32, #tpu.memory_space<vmem>>, vector<16x128xf32>,
    return
  }
  func.func @transform_0(%arg0: i32, %arg1: memref<1xi32, #tpu.memory_space<smem>>) -> (i32, i32) {
    %c0_i32 = arith.constant 0 : i32
    %c0_i32_0 = arith.constant 0 : i32
    return %arg0, %c0_i32 : i32, i32
  }
  func.func @transform_1(%arg0: i32, %arg1: memref<1xi32, #tpu.memory_space<smem>>) -> (i32, i32) {
    %c0_i32 = arith.constant 0 : i32
    %c0_i32_0 = arith.constant 0 : i32
    return %arg0, %c0_i32 : i32, i32
  }
}

</mosaic_0001>

<llo_original>
// kernel: tpu_custom_call.1
$region0: #{tpu_custom_call.1}
  #allocation0 [shape = 'u32[]', space=smem, size = 0x4, offset = 0x4, fixed_abs, tag = 'smem constant byte address 0x4 - core index']
  #allocation1 [shape = 'u32[144,128]{1,0:T(1,128)}', space=vmem, size = 0x12000, scoped, tag = 'internal scratch']
  #allocation2 [shape = 's32[1]{0}', space=sflag, size = 0x4, scoped, tag = 'scoped memory for tpu_custom_call.1']
  #allocation3 [shape = 's32[1]{0:T(128)S(6)}', space=smem, size = 0x200, scoped, tag = 'prefetched SMEM operand 0']
  %s0 = inlined_call_operand.<no memory space> [shape: s32[1], index: 0, kind: input, shape index: {}]
  %s1 = inlined_call_operand.hbm [shape: f32[16,128], index: 1, kind: input, shape index: {}]
  %s2 = inlined_call_operand.hbm [shape: f32[16,128], index: 2, kind: output, shape index: {}]
  %s3 = sld [smem:[#allocation0]]
  $region18: #{tpu_custom_call.1} parent=0
    _
  %s5 = ssub.s32 1, %s3
  %s6 = scalar_select 0, %s5, %s3
  %7 = sst [smem:[#allocation3]] %s0
  $region1: #{tpu_custom_call.1} parent=0
    #allocation4 [shape = 'u8[8192]{0}', space=vmem, size = 0x2000, scoped, tag = 'input window, operand 1, single buffered']
    #allocation5 [shape = 's32[1]{0}', space=sflag, size = 0x4, scoped, tag = 'scoped memory for tpu_custom_call.1']
    #allocation6 [shape = 's32[1]{0}', space=sflag, size = 0x4, scoped, tag = 'scoped memory for tpu_custom_call.1']
    #allocation7 [shape = 'u8[8192]{0}', space=vmem, size = 0x2000, scoped, tag = 'output window, operand 0, single buffered']
    %8 = vsyncpa [#allocation5], 0
    %9 = vsyncpa [#allocation6], 0
    // Predicated region
    $region2: #{tpu_custom_call.1} parent=1 // pred_check
      _
    $region3: #{tpu_custom_call.1} parent=1 // pred_check_branch
      %11 = sbr.rel (0) target = $region5
    $region4: #{tpu_custom_call.1} parent=1 // pred_region
      %s13 = ssub.s32 256, 256
      %14 = vsyncadd [#allocation5], %s13
      %s15 = sshll.u32 [#allocation4], 4
      %s16 = int_to_ptr.vmem [resolvable:$true] %s15
      %21 = dma.hbm_to_vmem [thread:$0]  %s1, 256, %s16, [#allocation5], 128, 128, 8
    $region5: #{tpu_custom_call.1} parent=1 // pred_fallthru
      _
    // Predicated region
    $region6: #{tpu_custom_call.1} parent=1 // pred_check
      _
    $region7: #{tpu_custom_call.1} parent=1 // pred_check_branch
      %23 = sbr.rel (0) target = $region9
    $region8: #{tpu_custom_call.1} parent=1 // pred_region
      %24 = dma.done [#allocation5], 256
    $region9: #{tpu_custom_call.1} parent=1 // pred_fallthru
      _
    %s25 = smul.u32 0, 2048
    %v26 = vlaneseq
    %v27 = vshrl.u32 %v26, 7
    %v28 = vadd.s32 %v27, 8
    %v29 = vlaneseq
    %v30 = vand.u32 %v29, 127
    %v31 = vmul.u32 %v27, 128
    %v32 = vmul.u32 %v28, 128
    %v33 = vadd.s32 %v31, %v30
    %v34 = vadd.s32 %v32, %v30
    %v35 = vstv %s25
    %v36 = vadd.s32 %v33, %v35
    %v37 = vadd.s32 %v34, %v35
    %s38 = sld [smem:[#allocation3]]
    %v39 = vmul.u32 %v36, 2654435761
    %v40 = vmul.u32 %v37, 2654435761
    %s41 = smul.u32 %s38, 2654435769
    %v42 = vstv %s41
    %v43 = vadd.s32 %v39, %v42
    %v44 = vadd.s32 %v40, %v42
    %v45 = vadd.s32 %v43, 2654435769
    %v46 = vadd.s32 %v44, 2654435769
    %v47 = vshrl.u32 %v45, 16
    %v48 = vshrl.u32 %v46, 16
    %v49 = vxor.u32 %v45, %v47
    %v50 = vxor.u32 %v46, %v48
    %v51 = vmul.u32 %v49, 2246822507
    %v52 = vmul.u32 %v50, 2246822507
    %v53 = vshrl.u32 %v51, 13
    %v54 = vshrl.u32 %v52, 13
    %v55 = vxor.u32 %v51, %v53
    %v56 = vxor.u32 %v52, %v54
    %v57 = vmul.u32 %v55, 3266489909
    %v58 = vmul.u32 %v56, 3266489909
    %v59 = vshrl.u32 %v57, 16
    %v60 = vshrl.u32 %v58, 16
    %v61 = vxor.u32 %v57, %v59
    %v62 = vxor.u32 %v58, %v60
    %v63 = vxor.u32 %v43, 1757159915
    %v64 = vxor.u32 %v44, 1757159915
    %v65 = vshrl.u32 %v63, 16
    %v66 = vshrl.u32 %v64, 16
    %v67 = vxor.u32 %v63, %v65
    %v68 = vxor.u32 %v64, %v66
    %v69 = vmul.u32 %v67, 2246822507
    %v70 = vmul.u32 %v68, 2246822507
    %v71 = vshrl.u32 %v69, 13
    %v72 = vshrl.u32 %v70, 13
    %v73 = vxor.u32 %v69, %v71
    %v74 = vxor.u32 %v70, %v72
    %v75 = vmul.u32 %v73, 3266489909
    %v76 = vmul.u32 %v74, 3266489909
    %v77 = vshrl.u32 %v75, 16
    %v78 = vshrl.u32 %v76, 16
    %v79 = vxor.u32 %v75, %v77
    %v80 = vxor.u32 %v76, %v78
    %v81 = vshrl.u32 %v61, 8
    %v82 = vshrl.u32 %v62, 8
    %v83 = vcvt.s32.f32 %v81
    %v84 = vcvt.s32.f32 %v82
    %v85 = vadd.f32 %v83, 1.0
    %v86 = vadd.f32 %v84, 1.0
    %v87 = vmul.f32 %v85, 5.9604645e-08
    %v88 = vmul.f32 %v86, 5.9604645e-08
    %v89 = vshrl.u32 %v79, 8
    %v90 = vshrl.u32 %v80, 8
    %v91 = vcvt.s32.f32 %v89
    %v92 = vcvt.s32.f32 %v90
    %v93 = vmul.f32 %v91, 5.9604645e-08
    %v94 = vmul.f32 %v92, 5.9604645e-08
    %v95 = vlog2.pop %v87
    %v96 = vmul.f32 %v95, 0.6931472
    %v97 = vlog2.pop %v88
    %v98 = vmul.f32 %v97, 0.6931472
    %v99 = vmul.f32 %v96, -2.0
    %v100 = vmul.f32 %v98, -2.0
    %v101 = vrsqrt.pop %v99
    %v102 = vmul.f32 %v99, %v101
    %vm103 = vcmp.eq.f32.partialorder %v99, inf
    %v104 = vsel %vm103, %v99, %v102
    %vm105 = vcmp.eq.f32.partialorder %v99, 0.0
    %v106 = vand.u32 %v99, 2147483648
    %v107 = vsel %vm105, %v106, %v104
    %v108 = vrsqrt.pop %v100
    %v109 = vmul.f32 %v100, %v108
    %vm110 = vcmp.eq.f32.partialorder %v100, inf
    %v111 = vsel %vm110, %v100, %v109
    %vm112 = vcmp.eq.f32.partialorder %v100, 0.0
    %v113 = vand.u32 %v100, 2147483648
    %v114 = vsel %vm112, %v113, %v111
    %v115 = vmul.f32 %v93, 6.2831855
    %v116 = vmul.f32 %v94, 6.2831855
    %v117 = vand.u32 2147483647, %v115
    %vm118 = vcmp.le.f32.partialorder %v117, 0.7853982
    %vm119 = vcmp.lt.s32.totalorder %v115, 0
    %v120 = vand.u32 %v115, 2139095040
    %v121 = vshrl.u32 %v120, 23
    %v122 = vsub.s32 %v121, 127
    %v123 = vand.u32 2147483647, %v115
    %v124 = vand.u32 %v123, 8388607
    %v125 = vor.u32 %v124, 8388608
    %v126 = vsub.s32 0, %v125
    %v127 = vadd.s32 %v122, 1
    %vm128 = vcmp.gt.s32.totalorder %v127, 0
    %v129 = vsel %vm128, %v127, 0
    %v130 = vshrl.u32 %v129, 5
    %v131 = vand.u32 %v129, 31
    %v132 = vsub.s32 32, %v131
    %v133 = vshrl.u32 683565275, %v132
    %v134 = vshll.u32 683565275, %v131
    %v135 = vshrl.u32 2475754826, %v132
    %v136 = vor.u32 %v134, %v135
    %v137 = vshll.u32 2475754826, %v131
    %v138 = vshrl.u32 2131351028, %v132
    %v139 = vor.u32 %v137, %v138
    %v140 = vshll.u32 2131351028, %v131
    %v141 = vshrl.u32 2102212464, %v132
    %v142 = vor.u32 %v140, %v141
    %v143 = vshll.u32 2102212464, %v131
    %v144 = vshrl.u32 920167782, %v132
    %v145 = vor.u32 %v143, %v144
    %v146 = vshll.u32 920167782, %v131
    %v147 = vshrl.u32 1326507024, %v132
    %v148 = vor.u32 %v146, %v147
    %vm149 = vcmp.lt.s32.totalorder %v130, 1
    %vm150 = vcmp.lt.s32.totalorder %v130, 2
    %vm151 = vcmp.lt.s32.totalorder %v130, 3
    %vm152 = vcmp.lt.s32.totalorder %v130, 4
    %v153 = vsel %vm149, %v133, %v136
    %v154 = vsel %vm152, %v142, 2102212464
    %v155 = vsel %vm151, %v139, %v154
    %v156 = vsel %vm150, %v153, %v155
    %v157 = vsel %vm149, %v136, %v139
    %v158 = vsel %vm152, %v145, 920167782
    %v159 = vsel %vm151, %v142, %v158
    %v160 = vsel %vm150, %v157, %v159
    %v161 = vsel %vm149, %v139, %v142
    %v162 = vsel %vm152, %v148, 1326507024
    %v163 = vsel %vm151, %v145, %v162
    %v164 = vsel %vm150, %v161, %v163
    %v165 = vshll.u32 %v125, 8
    %v166 = vmul.u32.u64.compose %v165, %v164
    %v167 = vextract.low.u32 %v166
    %v168 = vextract.high.u32 %v166
    %v169 = vmul.u32.u64.compose %v165, %v160
    %v170 = vextract.low.u32 %v169
    %v171 = vextract.high.u32 %v169
    %v172 = vmul.u32 %v165, %v156
    %v173 = vadd.s32 %v168, %v170
    %vm174 = vc.u32 %v168, %v170
    %v175 = vadd.s32 %v171, 1
    %v176 = vsel %vm174, %v175, %v171
    %v177 = vadd.s32 %v172, %v176
    %v178 = vadd.s32 %v177, 536870912
    %v179 = vshrl.u32 %v178, 30
    %v180 = vshll.u32 %v179, 30
    %v181 = vsub.s32 %v177, %v180
    %vm182 = vcmp.lt.s32.totalorder %v181, 0
    %v183 = vsub.s32 0, %v181
    %v184 = vsel %vm182, %v183, %v181
    %v185 = vclz %v184
    %v186 = vsub.s32 %v185, 2
    %vm187 = vcmp.gt.s32.totalorder 0, %v186
    %v188 = vsel %vm187, 0, %v186
    %v189 = vsub.s32 32, %v188
    %v190 = vshll.u32 %v181, %v188
    %v191 = vshrl.u32 %v173, %v189
    %v192 = vor.u32 %v190, %v191
    %v193 = vsub.s32 4294967266, %v188
    %v194 = vadd.s32 %v193, 127
    %v195 = vshll.u32 %v194, 23
    %v196 = vor.u32 4788187, %v195
    %v197 = vand.u32 2147483647, %v196
    %v199 = vcvt.s32.f32 %v192
    %v200 = vmul.f32 %v199, %v197
    %v201 = vxor.u32 %v200, 2147483648
    %v202 = vsel %vm119, %v201, %v200
    %v203 = vsub.s32 4, %v179
    %v204 = vsel %vm119, %v203, %v179
    %v205 = vsel %vm118, %v115, %v202
    %v206 = vsel %vm118, 0, %v204
    %v207 = vcosq.f32.pop %v205
    %v208 = vsinq.f32.pop %v205
    %vm209 = vweird.f32 %v115
    %v210 = vand.u32 %v206, 3
    %vm211 = vcmp.lt.s32.totalorder %v210, 2
    %vm212 = vcmp.eq.s32.totalorder %v210, 0
    %v213 = vxor.u32 %v208, 2147483648
    %v214 = vsel %vm212, %v207, %v213
    %vm215 = vcmp.eq.s32.totalorder %v210, 2
    %v216 = vxor.u32 %v207, 2147483648
    %v217 = vsel %vm215, %v216, %v208
    %v218 = vsel %vm211, %v214, %v217
    %v219 = vsel %vm209, nan, %v218
    %v220 = vand.u32 2147483647, %v116
    %vm221 = vcmp.le.f32.partialorder %v220, 0.7853982
    %vm222 = vcmp.lt.s32.totalorder %v116, 0
    %v223 = vand.u32 %v116, 2139095040
    %v224 = vshrl.u32 %v223, 23
    %v225 = vsub.s32 %v224, 127
    %v226 = vand.u32 2147483647, %v116
    %v227 = vand.u32 %v226, 8388607
    %v228 = vor.u32 %v227, 8388608
    %v229 = vsub.s32 0, %v228
    %v230 = vadd.s32 %v225, 1
    %vm231 = vcmp.gt.s32.totalorder %v230, 0
    %v232 = vsel %vm231, %v230, 0
    %v233 = vshrl.u32 %v232, 5
    %v234 = vand.u32 %v232, 31
    %v235 = vsub.s32 32, %v234
    %v236 = vshrl.u32 683565275, %v235
    %v237 = vshll.u32 683565275, %v234
    %v238 = vshrl.u32 2475754826, %v235
    %v239 = vor.u32 %v237, %v238
    %v240 = vshll.u32 2475754826, %v234
    %v241 = vshrl.u32 2131351028, %v235
    %v242 = vor.u32 %v240, %v241
    %v243 = vshll.u32 2131351028, %v234
    %v244 = vshrl.u32 2102212464, %v235
    %v245 = vor.u32 %v243, %v244
    %v246 = vshll.u32 2102212464, %v234
    %v247 = vshrl.u32 920167782, %v235
    %v248 = vor.u32 %v246, %v247
    %v249 = vshll.u32 920167782, %v234
    %v250 = vshrl.u32 1326507024, %v235
    %v251 = vor.u32 %v249, %v250
    %vm252 = vcmp.lt.s32.totalorder %v233, 1
    %vm253 = vcmp.lt.s32.totalorder %v233, 2
    %vm254 = vcmp.lt.s32.totalorder %v233, 3
    %vm255 = vcmp.lt.s32.totalorder %v233, 4
    %v256 = vsel %vm252, %v236, %v239
    %v257 = vsel %vm255, %v245, 2102212464
    %v258 = vsel %vm254, %v242, %v257
    %v259 = vsel %vm253, %v256, %v258
    %v260 = vsel %vm252, %v239, %v242
    %v261 = vsel %vm255, %v248, 920167782
    %v262 = vsel %vm254, %v245, %v261
    %v263 = vsel %vm253, %v260, %v262
    %v264 = vsel %vm252, %v242, %v245
    %v265 = vsel %vm255, %v251, 1326507024
    %v266 = vsel %vm254, %v248, %v265
    %v267 = vsel %vm253, %v264, %v266
    %v268 = vshll.u32 %v228, 8
    %v269 = vmul.u32.u64.compose %v268, %v267
    %v270 = vextract.low.u32 %v269
    %v271 = vextract.high.u32 %v269
    %v272 = vmul.u32.u64.compose %v268, %v263
    %v273 = vextract.low.u32 %v272
    %v274 = vextract.high.u32 %v272
    %v275 = vmul.u32 %v268, %v259
    %v276 = vadd.s32 %v271, %v273
    %vm277 = vc.u32 %v271, %v273
    %v278 = vadd.s32 %v274, 1
    %v279 = vsel %vm277, %v278, %v274
    %v280 = vadd.s32 %v275, %v279
    %v281 = vadd.s32 %v280, 536870912
    %v282 = vshrl.u32 %v281, 30
    %v283 = vshll.u32 %v282, 30
    %v284 = vsub.s32 %v280, %v283
    %vm285 = vcmp.lt.s32.totalorder %v284, 0
    %v286 = vsub.s32 0, %v284
    %v287 = vsel %vm285, %v286, %v284
    %v288 = vclz %v287
    %v289 = vsub.s32 %v288, 2
    %vm290 = vcmp.gt.s32.totalorder 0, %v289
    %v291 = vsel %vm290, 0, %v289
    %v292 = vsub.s32 32, %v291
    %v293 = vshll.u32 %v284, %v291
    %v294 = vshrl.u32 %v276, %v292
    %v295 = vor.u32 %v293, %v294
    %v296 = vsub.s32 4294967266, %v291
    %v297 = vadd.s32 %v296, 127
    %v298 = vshll.u32 %v297, 23
    %v299 = vor.u32 4788187, %v298
    %v300 = vand.u32 2147483647, %v299
    %v302 = vcvt.s32.f32 %v295
    %v303 = vmul.f32 %v302, %v300
    %v304 = vxor.u32 %v303, 2147483648
    %v305 = vsel %vm222, %v304, %v303
    %v306 = vsub.s32 4, %v282
    %v307 = vsel %vm222, %v306, %v282
    %v308 = vsel %vm221, %v116, %v305
    %v309 = vsel %vm221, 0, %v307
    %v310 = vcosq.f32.pop %v308
    %v311 = vsinq.f32.pop %v308
    %vm312 = vweird.f32 %v116
    %v313 = vand.u32 %v309, 3
    %vm314 = vcmp.lt.s32.totalorder %v313, 2
    %vm315 = vcmp.eq.s32.totalorder %v313, 0
    %v316 = vxor.u32 %v311, 2147483648
    %v317 = vsel %vm315, %v310, %v316
    %vm318 = vcmp.eq.s32.totalorder %v313, 2
    %v319 = vxor.u32 %v310, 2147483648
    %v320 = vsel %vm318, %v319, %v311
    %v321 = vsel %vm314, %v317, %v320
    %v322 = vsel %vm312, nan, %v321
    %v323 = vmul.f32 %v107, %v219
    %v324 = vmul.f32 %v114, %v322
    %v325 = vld [vmem:[#allocation4] sm:$0xff]
    %v326 = vld [vmem:[#allocation4 + $0x8] sm:$0xff]
    %v327 = vmul.f32 %v323, 0.1
    %v328 = vmul.f32 %v324, 0.1
    %v329 = vadd.f32 %v327, 1.0
    %v330 = vadd.f32 %v328, 1.0
    %v331 = vmul.f32 %v325, %v329
    %v332 = vmul.f32 %v326, %v330
    %333 = vst [vmem:[#allocation7] sm:$0xff] %v331
    %334 = vst [vmem:[#allocation7 + $0x8] sm:$0xff] %v332
    // Predicated region
    $region10: #{tpu_custom_call.1} parent=1 // pred_check
      _
    $region11: #{tpu_custom_call.1} parent=1 // pred_check_branch
      %336 = sbr.rel (0) target = $region13
    $region12: #{tpu_custom_call.1} parent=1 // pred_region
      %s338 = ssub.s32 256, 256
      %339 = vsyncadd [#allocation6], %s338
      %s340 = sshll.u32 [#allocation7], 4
      %s341 = int_to_ptr.vmem [resolvable:$true] %s340
      %346 = dma.vmem_to_hbm [thread:$0]  %s341, 256, %s2, [#allocation6], 128, 128, 8
    $region13: #{tpu_custom_call.1} parent=1 // pred_fallthru
      _
    // Predicated region
    $region14: #{tpu_custom_call.1} parent=1 // pred_check
      _
    $region15: #{tpu_custom_call.1} parent=1 // pred_check_branch
      %348 = sbr.rel (0) target = $region17
    $region16: #{tpu_custom_call.1} parent=1 // pred_region
      %349 = dma.done [#allocation6], 256
    $region17: #{tpu_custom_call.1} parent=1 // pred_fallthru
      _
    %350 = vsyncpa [#allocation5], 1
    %351 = vsyncpa [#allocation6], 1

</llo_original>
